<compile_context>
chip_gen: v5e
topology: v5e:2x2
jax: 0.10.0
libtpu: 0.0.40
codegen_flags: <defaults>
</compile_context>

<pallas_src>
import math

import jax
import jax.numpy as jnp
from jax import lax
from jax.experimental import pallas as pl
from jax.experimental.pallas import tpu as pltpu


LANE = 128


def _round_up(x, m):
    return ((x + m - 1) // m) * m


def _auto_row_tile(L, W, O_pad, budget_bytes=4 << 20):
    """Largest row tile TR (divisor of L, (TR*W) % 8 == 0 or TR == L) whose
    f32 output block fits the budget; falls back to the smallest valid TR."""
    fallback = L
    for tr in range(L, 0, -1):
        if L % tr:
            continue
        if tr != L and (tr * W) % 8 != 0:
            continue
        fallback = tr
        if tr * W * O_pad * 4 <= budget_bytes:
            return tr
    return fallback


# ----------------------------------------------------------------------------
# Fused P-way SepConv2d Pallas kernel
#   depthwise 3x3 (stride 1, pad 1) -> ReLU -> pointwise 1x1, for P projections
#   that share the same input image (q/k/v, or k/v).
# ----------------------------------------------------------------------------
def fused_sep_conv2d_pallas(x_img, dw_w, dw_b, pw_w, pw_b, *, row_tile=None):
    """
    x_img : (B, L, W, C)      input image, NHWC
    dw_w  : (P*9, C)          depthwise taps, row index = p*9 + ki*3 + kj
    dw_b  : (P, C)            depthwise biases
    pw_w  : (P, C, O_pad)     pointwise weights; projection p lives in its own
                              column band [p*O, (p+1)*O), zero elsewhere
                              (so the P matmuls simply sum into one slab)
    pw_b  : (1, O_pad)        concatenated + zero-padded pointwise biases
    returns (B, L*W, O_pad)
    """
    B, L, W, C = x_img.shape
    P = dw_w.shape[0] // 9
    O_pad = pw_w.shape[-1]
    assert O_pad % LANE == 0, "output lane dim must be a multiple of 128"

    TR = row_tile if row_tile is not None else _auto_row_tile(L, W, O_pad)
    assert L % TR == 0, "row_tile must divide L"
    assert TR == L or (TR * W) % 8 == 0, "row tile must keep output 8-aligned"
    NT = L // TR

    # bf16 MXU operands on bf16 inputs (v6e/v7x); f32 otherwise (exact vs ref).
    mxu_dtype = jnp.bfloat16 if x_img.dtype == jnp.bfloat16 else jnp.float32

    def kernel(x_ref, dww_ref, dwb_ref, pww_ref, pwb_ref, o_ref, xp_ref):
        t = pl.program_id(1)

        # Build the zero-padded image in VMEM once per batch element (tile 0);
        # no HBM pad round trip.  Scratch persists across the row-tile axis
        # (which is marked "arbitrary" for exactly this reason).
        @pl.when(t == 0)
        def _fill_padded_input():
            xp_ref[...] = jnp.zeros_like(xp_ref)
            xp_ref[1:L + 1, 1:W + 1, :] = x_ref[0].astype(jnp.float32)

        dww = dww_ref[...].astype(jnp.float32)            # (P*9, C)
        r0 = pl.multiple_of(t * TR, TR)
        xt = xp_ref[pl.ds(r0, TR + 2), :, :]              # (TR+2, W+2, C) halo rows

        out = jnp.zeros((TR * W, O_pad), jnp.float32)
        for p in range(P):
            # Depthwise 3x3: init with the (0,0) tap, then 8 more taps.
            # NOTE: the kj shifts are sublane-offset slices; a pltpu.roll-based
            # variant would push them onto the (idle) XLU, left as a follow-up.
            acc = xt[0:TR, 0:W, :] * dww[p * 9, :]
            for idx in range(1, 9):
                ki, kj = divmod(idx, 3)
                acc = acc + xt[ki:ki + TR, kj:kj + W, :] * dww[p * 9 + idx, :]
            acc = acc + dwb_ref[p, :].astype(jnp.float32)
            acc = jnp.maximum(acc, 0.0)                   # SepConv2d ReLU (f32 VPU)

            # Pointwise 1x1 == matmul over channels (MXU). pw_w[p] already has
            # this projection's columns placed in its own band, so the P
            # matmuls accumulate into one lane-dense (TR*W, O_pad) slab.
            y = acc.reshape(TR * W, C).astype(mxu_dtype)
            out = out + jnp.dot(y, pww_ref[p].astype(mxu_dtype),
                                preferred_element_type=jnp.float32)

        out = out + pwb_ref[0, :].astype(jnp.float32)
        o_ref[0] = out.astype(o_ref.dtype)

    flops = 2 * B * L * W * P * (9 * C + C * O_pad)
    bytes_accessed = (x_img.size * x_img.dtype.itemsize
                      + dw_w.size * dw_w.dtype.itemsize
                      + dw_b.size * dw_b.dtype.itemsize
                      + pw_w.size * pw_w.dtype.itemsize
                      + pw_b.size * pw_b.dtype.itemsize
                      + B * L * W * O_pad * x_img.dtype.itemsize)

    return pl.pallas_call(
        kernel,
        out_shape=jax.ShapeDtypeStruct((B, L * W, O_pad), x_img.dtype),
        grid=(B, NT),
        in_specs=[
            pl.BlockSpec((1, L, W, C), lambda b, t: (b, 0, 0, 0)),
            pl.BlockSpec(dw_w.shape, lambda b, t: (0, 0)),
            pl.BlockSpec(dw_b.shape, lambda b, t: (0, 0)),
            pl.BlockSpec(pw_w.shape, lambda b, t: (0, 0, 0)),
            pl.BlockSpec(pw_b.shape, lambda b, t: (0, 0)),
        ],
        out_specs=pl.BlockSpec((1, TR * W, O_pad), lambda b, t: (b, t, 0)),
        scratch_shapes=[pltpu.VMEM((L + 2, W + 2, C), jnp.float32)],
        compiler_params=pltpu.CompilerParams(
            dimension_semantics=("parallel", "arbitrary"),
            vmem_limit_bytes=64 * 1024 * 1024),
        cost_estimate=pl.CostEstimate(flops=flops, transcendentals=0,
                                      bytes_accessed=bytes_accessed),
    )(x_img, dw_w, dw_b, pw_w, pw_b)


# ----------------------------------------------------------------------------
# Parameter packing: stack P projections into the fused-kernel layout
# ----------------------------------------------------------------------------
def _pack_projection_params(plist):
    P = len(plist)
    kh, kw, C = plist[0]["dw_w"].shape
    O = plist[0]["pw_w"].shape[1]
    O_pad = _round_up(P * O, LANE)

    dw_w = jnp.concatenate([p["dw_w"].reshape(kh * kw, C) for p in plist], axis=0)
    dw_b = jnp.stack([p["dw_b"] for p in plist], axis=0)

    pw_w = jnp.zeros((P, C, O_pad), plist[0]["pw_w"].dtype)
    pw_b = jnp.zeros((O_pad,), plist[0]["pw_b"].dtype)
    for i, p in enumerate(plist):
        pw_w = pw_w.at[i, :, i * O:(i + 1) * O].set(p["pw_w"])
        pw_b = pw_b.at[i * O:(i + 1) * O].set(p["pw_b"])
    return dw_w, dw_b, pw_w, pw_b.reshape(1, O_pad), O


# ----------------------------------------------------------------------------
# ConvProjection forward (glue around the fused Pallas call)
# ----------------------------------------------------------------------------
def conv_projection_forward(x, params, heads, attn_kv=None, row_tile=None):
    """x: (b, n, c) tokens, n = l*w square.  Returns (q, k, v), each
    (b, heads, n, dim_head)."""
    b, n, c = x.shape
    l = int(round(math.sqrt(n)))
    w = l
    assert l * w == n, "sequence length must be a perfect square"

    x_img = x.reshape(b, l, w, c)

    def run(img, names):
        plist = [params[nm] for nm in names]
        dw_w, dw_b, pw_w, pw_b, O = _pack_projection_params(plist)
        out = fused_sep_conv2d_pallas(img, dw_w, dw_b, pw_w, pw_b,
                                      row_tile=row_tile)   # (b, n, O_pad)
        d = O // heads
        # TODO(synk): a layout-aware attention consumer could take the fused
        # (b, n, heads*d) slab directly and skip this transpose round trip.
        res = []
        for i in range(len(names)):
            t = out[..., i * O:(i + 1) * O]                # slice + head split,
            res.append(t.reshape(b, n, heads, d).transpose(0, 2, 1, 3))
        return res

    if attn_kv is None:
        q, k, v = run(x_img, ("q", "k", "v"))              # one HBM read of x
    else:
        kv_img = attn_kv.reshape(b, l, w, c)
        (q,) = run(x_img, ("q",))
        k, v = run(kv_img, ("k", "v"))                     # k/v share attn_kv read
    return q, k, v


# ----------------------------------------------------------------------------
# Deterministic parameter init (matches the shapes implied by __init__)
# ----------------------------------------------------------------------------
def init_params(key, dim, heads, dim_head, kernel_size=3):
    inner_dim = dim_head * heads
    params = {}
    for name in ("q", "k", "v"):
        key, k1, k2, k3, k4 = jax.random.split(key, 5)
        params[name] = {
            # depthwise Conv2d(dim, dim, 3, groups=dim): per-channel 3x3 + bias
            "dw_w": jax.random.normal(k1, (kernel_size, kernel_size, dim),
                                      jnp.float32) * 0.1,
            "dw_b": jax.random.normal(k2, (dim,), jnp.float32) * 0.1,
            # pointwise Conv2d(dim, inner_dim, 1): (C, O) + bias
            "pw_w": jax.random.normal(k3, (dim, inner_dim), jnp.float32) * 0.1,
            "pw_b": jax.random.normal(k4, (inner_dim,), jnp.float32) * 0.1,
        }
    return params


# ----------------------------------------------------------------------------
# Pure-JAX reference (lax.conv) for correctness checks
# ----------------------------------------------------------------------------
def sep_conv2d_ref(x_nhwc, dw_w, dw_b, pw_w, pw_b):
    B, L, W, C = x_nhwc.shape
    O = pw_w.shape[1]
    dn = ("NHWC", "HWIO", "NHWC")
    y = lax.conv_general_dilated(
        x_nhwc, dw_w.reshape(3, 3, 1, C), window_strides=(1, 1),
        padding=((1, 1), (1, 1)), dimension_numbers=dn,
        feature_group_count=C)
    y = y + dw_b
    y = jnp.maximum(y, 0.0)
    z = lax.conv_general_dilated(
        y, pw_w.reshape(1, 1, C, O), window_strides=(1, 1),
        padding=((0, 0), (0, 0)), dimension_numbers=dn)
    z = z + pw_b
    return z.reshape(B, L * W, O)


def conv_projection_ref(x, params, heads, attn_kv=None):
    b, n, c = x.shape
    l = int(round(math.sqrt(n)))
    attn_kv = x if attn_kv is None else attn_kv
    x_img = x.reshape(b, l, l, c)
    kv_img = attn_kv.reshape(b, l, l, c)

    def project(img, p):
        out = sep_conv2d_ref(img, p["dw_w"], p["dw_b"], p["pw_w"], p["pw_b"])
        B, N, O = out.shape
        d = O // heads
        return out.reshape(B, N, heads, d).transpose(0, 2, 1, 3)

    return (project(x_img, params["q"]),
            project(kv_img, params["k"]),
            project(kv_img, params["v"]))


if __name__ == "__main__":
    # Small shapes consistent with the module: dim=8, heads=2, dim_head=8,
    # batch=2, seq n=16 (4x4 spatial).
    dim, heads, dim_head = 8, 2, 8
    b, n = 2, 16

    key = jax.random.PRNGKey(0)
    key, kx, kkv, kp = jax.random.split(key, 4)
    x = jax.random.normal(kx, (b, n, dim), jnp.float32)
    kv = jax.random.normal(kkv, (b, n, dim), jnp.float32)
    params = init_params(kp, dim, heads, dim_head)

    qr, kr, vr = conv_projection_ref(x, params, heads)

    # 1) Fully fused q/k/v, auto (whole-image) row tile.
    q, k, v = conv_projection_forward(x, params, heads)
    jax.block_until_ready((q, k, v))
    assert q.shape == (b, heads, n, dim_head)
    assert k.shape == (b, heads, n, dim_head)
    assert v.shape == (b, heads, n, dim_head)
    assert jnp.allclose(q, qr, atol=1e-4, rtol=1e-4)
    assert jnp.allclose(k, kr, atol=1e-4, rtol=1e-4)
    assert jnp.allclose(v, vr, atol=1e-4, rtol=1e-4)

    # 2) Multi-row-tile pipeline path (grid = (B, 2)).
    q2, k2, v2 = conv_projection_forward(x, params, heads, row_tile=2)
    jax.block_until_ready((q2, k2, v2))
    assert jnp.allclose(q2, qr, atol=1e-4, rtol=1e-4)
    assert jnp.allclose(k2, kr, atol=1e-4, rtol=1e-4)
    assert jnp.allclose(v2, vr, atol=1e-4, rtol=1e-4)

    # 3) Cross-attention style input: q on x, fused k/v on attn_kv.
    q3, k3, v3 = conv_projection_forward(x, params, heads, attn_kv=kv)
    jax.block_until_ready((q3, k3, v3))
    qr3, kr3, vr3 = conv_projection_ref(x, params, heads, attn_kv=kv)
    assert jnp.allclose(q3, qr3, atol=1e-4, rtol=1e-4)
    assert jnp.allclose(k3, kr3, atol=1e-4, rtol=1e-4)
    assert jnp.allclose(v3, vr3, atol=1e-4, rtol=1e-4)

    print("KERNEL_OK")
</pallas_src>

<mosaic_0001>
module attributes {stable_mosaic.version = 11 : i64} {
  func.func @kernel(%arg0: i32, %arg1: i32, %arg2: memref<1x4x4x8xf32, #tpu.memory_space<vmem>>, %arg3: memref<27x8xf32, #tpu.memory_space<vmem>>, %arg4: memref<3x8xf32, #tpu.memory_space<vmem>>, %arg5: memref<3x8x128xf32, #tpu.memory_space<vmem>>, %arg6: memref<1x128xf32, #tpu.memory_space<vmem>>, %arg7: memref<1x16x128xf32, #tpu.memory_space<vmem>>, %arg8: memref<6x6x8xf32, #tpu.memory_space<vmem>>) attributes {dimension_semantics = [#tpu.dimension_semantics<parallel>, #tpu.dimension_semantics<arbitrary>], iteration_bounds = array<i64: 2, 1>, scalar_prefetch = 0 : i64, scratch_operands = 1 : i64, tpu.core_type = #tpu.core_type<tc>, window_params = [{transform_indices = @transform_0, window_bounds = array<i64: 1, 4, 4, 8>}, {pipeline_mode = #tpu.pipeline_mode<synchronous>, transform_indices = @transform_1, window_bounds = array<i64: 27, 8>}, {pipeline_mode = #tpu.pipeline_mode<synchronous>, transform_indices = @transform_2, window_bounds = array<i64: 3, 8>}, {pipeline_mode = #tpu.pipeline_mode<synchronous>, transform_indices = @transform_3, window_bounds = array<i64: 3, 8, 128>}, {pipeline_mode = #tpu.pipeline_mode<synchronous>, transform_indices = @transform_4, window_bounds = array<i64: 1, 128>}, {transform_indices = @transform_5, window_bounds = array<i64: 1, 16, 128>}]} {
    %c0_i32 = arith.constant 0 : i32
    %0 = arith.cmpi eq, %arg1, %c0_i32 : i32
    %1 = arith.extui %0 : i1 to i32
    %c0_i32_0 = arith.constant 0 : i32
    %2 = arith.cmpi ne, %1, %c0_i32_0 : i32
    scf.if %2 {
      %cst_28 = arith.constant 0.000000e+00 : f32
      %239 = vector.broadcast %cst_28 : f32 to vector<6x6x8xf32>
      %c0_29 = arith.constant 0 : index
      %c0_30 = arith.constant 0 : index
      %c0_31 = arith.constant 0 : index
      %240 = vector.load %arg8[%c0_29, %c0_30, %c0_31] : memref<6x6x8xf32, #tpu.memory_space<vmem>>, vector<6x6x8xf32>
      tpu.vector_store %arg8[%c0_29, %c0_30, %c0_31], %239 {strides = array<i32>} : memref<6x6x8xf32, #tpu.memory_space<vmem>>, vector<6x6x8xf32>,
      %c0_32 = arith.constant 0 : index
      %c0_33 = arith.constant 0 : index
      %c0_34 = arith.constant 0 : index
      %c0_35 = arith.constant 0 : index
      %241 = vector.load %arg2[%c0_32, %c0_33, %c0_34, %c0_35] : memref<1x4x4x8xf32, #tpu.memory_space<vmem>>, vector<1x4x4x8xf32>
      %242 = vector.shape_cast %241 : vector<1x4x4x8xf32> to vector<4x4x8xf32>
      %c1_36 = arith.constant 1 : index
      %c1_37 = arith.constant 1 : index
      %c0_38 = arith.constant 0 : index
      %243 = vector.load %arg8[%c1_36, %c1_37, %c0_38] : memref<6x6x8xf32, #tpu.memory_space<vmem>>, vector<4x4x8xf32>
      tpu.vector_store %arg8[%c1_36, %c1_37, %c0_38], %242 {strides = array<i32>} : memref<6x6x8xf32, #tpu.memory_space<vmem>>, vector<4x4x8xf32>,
    } else {
    }
    %c0 = arith.constant 0 : index
    %c0_1 = arith.constant 0 : index
    %3 = vector.load %arg3[%c0, %c0_1] : memref<27x8xf32, #tpu.memory_space<vmem>>, vector<27x8xf32>
    %c4_i32 = arith.constant 4 : i32
    %4 = arith.muli %arg1, %c4_i32 : i32
    %5 = tpu.assume_multiple %4, 4 : i32
    %6 = arith.index_cast %5 : i32 to index
    %c0_2 = arith.constant 0 : index
    %c0_3 = arith.constant 0 : index
    %7 = vector.load %arg8[%6, %c0_2, %c0_3] : memref<6x6x8xf32, #tpu.memory_space<vmem>>, vector<6x6x8xf32>
    %cst = arith.constant 0.000000e+00 : f32
    %8 = vector.broadcast %cst : f32 to vector<16x128xf32>
    %9 = vector.extract_strided_slice %7 {offsets = [0, 0, 0], sizes = [4, 4, 8], strides = [1, 1, 1]} : vector<6x6x8xf32> to vector<4x4x8xf32>
    %10 = vector.extract_strided_slice %3 {offsets = [0, 0], sizes = [1, 8], strides = [1, 1]} : vector<27x8xf32> to vector<1x8xf32>
    %11 = vector.shape_cast %10 : vector<1x8xf32> to vector<8xf32>
    %12 = vector.shape_cast %11 : vector<8xf32> to vector<1x1x8xf32>
    %13 = vector.broadcast %12 : vector<1x1x8xf32> to vector<4x4x8xf32>
    %14 = arith.mulf %9, %13 : vector<4x4x8xf32>
    %15 = vector.extract_strided_slice %7 {offsets = [0, 1, 0], sizes = [4, 4, 8], strides = [1, 1, 1]} : vector<6x6x8xf32> to vector<4x4x8xf32>
    %16 = vector.extract_strided_slice %3 {offsets = [1, 0], sizes = [1, 8], strides = [1, 1]} : vector<27x8xf32> to vector<1x8xf32>
    %17 = vector.shape_cast %16 : vector<1x8xf32> to vector<8xf32>
    %18 = vector.shape_cast %17 : vector<8xf32> to vector<1x1x8xf32>
    %19 = vector.broadcast %18 : vector<1x1x8xf32> to vector<4x4x8xf32>
    %20 = arith.mulf %15, %19 : vector<4x4x8xf32>
    %21 = arith.addf %14, %20 : vector<4x4x8xf32>
    %22 = vector.extract_strided_slice %7 {offsets = [0, 2, 0], sizes = [4, 4, 8], strides = [1, 1, 1]} : vector<6x6x8xf32> to vector<4x4x8xf32>
    %23 = vector.extract_strided_slice %3 {offsets = [2, 0], sizes = [1, 8], strides = [1, 1]} : vector<27x8xf32> to vector<1x8xf32>
    %24 = vector.shape_cast %23 : vector<1x8xf32> to vector<8xf32>
    %25 = vector.shape_cast %24 : vector<8xf32> to vector<1x1x8xf32>
    %26 = vector.broadcast %25 : vector<1x1x8xf32> to vector<4x4x8xf32>
    %27 = arith.mulf %22, %26 : vector<4x4x8xf32>
    %28 = arith.addf %21, %27 : vector<4x4x8xf32>
    %29 = vector.extract_strided_slice %7 {offsets = [1, 0, 0], sizes = [4, 4, 8], strides = [1, 1, 1]} : vector<6x6x8xf32> to vector<4x4x8xf32>
    %30 = vector.extract_strided_slice %3 {offsets = [3, 0], sizes = [1, 8], strides = [1, 1]} : vector<27x8xf32> to vector<1x8xf32>
    %31 = vector.shape_cast %30 : vector<1x8xf32> to vector<8xf32>
    %32 = vector.shape_cast %31 : vector<8xf32> to vector<1x1x8xf32>
    %33 = vector.broadcast %32 : vector<1x1x8xf32> to vector<4x4x8xf32>
    %34 = arith.mulf %29, %33 : vector<4x4x8xf32>
    %35 = arith.addf %28, %34 : vector<4x4x8xf32>
    %36 = vector.extract_strided_slice %7 {offsets = [1, 1, 0], sizes = [4, 4, 8], strides = [1, 1, 1]} : vector<6x6x8xf32> to vector<4x4x8xf32>
    %37 = vector.extract_strided_slice %3 {offsets = [4, 0], sizes = [1, 8], strides = [1, 1]} : vector<27x8xf32> to vector<1x8xf32>
    %38 = vector.shape_cast %37 : vector<1x8xf32> to vector<8xf32>
    %39 = vector.shape_cast %38 : vector<8xf32> to vector<1x1x8xf32>
    %40 = vector.broadcast %39 : vector<1x1x8xf32> to vector<4x4x8xf32>
    %41 = arith.mulf %36, %40 : vector<4x4x8xf32>
    %42 = arith.addf %35, %41 : vector<4x4x8xf32>
    %43 = vector.extract_strided_slice %7 {offsets = [1, 2, 0], sizes = [4, 4, 8], strides = [1, 1, 1]} : vector<6x6x8xf32> to vector<4x4x8xf32>
    %44 = vector.extract_strided_slice %3 {offsets = [5, 0], sizes = [1, 8], strides = [1, 1]} : vector<27x8xf32> to vector<1x8xf32>
    %45 = vector.shape_cast %44 : vector<1x8xf32> to vector<8xf32>
    %46 = vector.shape_cast %45 : vector<8xf32> to vector<1x1x8xf32>
    %47 = vector.broadcast %46 : vector<1x1x8xf32> to vector<4x4x8xf32>
    %48 = arith.mulf %43, %47 : vector<4x4x8xf32>
    %49 = arith.addf %42, %48 : vector<4x4x8xf32>
    %50 = vector.extract_strided_slice %7 {offsets = [2, 0, 0], sizes = [4, 4, 8], strides = [1, 1, 1]} : vector<6x6x8xf32> to vector<4x4x8xf32>
    %51 = vector.extract_strided_slice %3 {offsets = [6, 0], sizes = [1, 8], strides = [1, 1]} : vector<27x8xf32> to vector<1x8xf32>
    %52 = vector.shape_cast %51 : vector<1x8xf32> to vector<8xf32>
    %53 = vector.shape_cast %52 : vector<8xf32> to vector<1x1x8xf32>
    %54 = vector.broadcast %53 : vector<1x1x8xf32> to vector<4x4x8xf32>
    %55 = arith.mulf %50, %54 : vector<4x4x8xf32>
    %56 = arith.addf %49, %55 : vector<4x4x8xf32>
    %57 = vector.extract_strided_slice %7 {offsets = [2, 1, 0], sizes = [4, 4, 8], strides = [1, 1, 1]} : vector<6x6x8xf32> to vector<4x4x8xf32>
    %58 = vector.extract_strided_slice %3 {offsets = [7, 0], sizes = [1, 8], strides = [1, 1]} : vector<27x8xf32> to vector<1x8xf32>
    %59 = vector.shape_cast %58 : vector<1x8xf32> to vector<8xf32>
    %60 = vector.shape_cast %59 : vector<8xf32> to vector<1x1x8xf32>
    %61 = vector.broadcast %60 : vector<1x1x8xf32> to vector<4x4x8xf32>
    %62 = arith.mulf %57, %61 : vector<4x4x8xf32>
    %63 = arith.addf %56, %62 : vector<4x4x8xf32>
    %64 = vector.extract_strided_slice %7 {offsets = [2, 2, 0], sizes = [4, 4, 8], strides = [1, 1, 1]} : vector<6x6x8xf32> to vector<4x4x8xf32>
    %65 = vector.extract_strided_slice %3 {offsets = [8, 0], sizes = [1, 8], strides = [1, 1]} : vector<27x8xf32> to vector<1x8xf32>
    %66 = vector.shape_cast %65 : vector<1x8xf32> to vector<8xf32>
    %67 = vector.shape_cast %66 : vector<8xf32> to vector<1x1x8xf32>
    %68 = vector.broadcast %67 : vector<1x1x8xf32> to vector<4x4x8xf32>
    %69 = arith.mulf %64, %68 : vector<4x4x8xf32>
    %70 = arith.addf %63, %69 : vector<4x4x8xf32>
    %c0_4 = arith.constant 0 : index
    %c0_5 = arith.constant 0 : index
    %71 = vector.load %arg4[%c0_4, %c0_5] : memref<3x8xf32, #tpu.memory_space<vmem>>, vector<1x8xf32>
    %72 = vector.shape_cast %71 : vector<1x8xf32> to vector<8xf32>
    %73 = vector.shape_cast %72 : vector<8xf32> to vector<1x1x8xf32>
    %74 = vector.broadcast %73 : vector<1x1x8xf32> to vector<4x4x8xf32>
    %75 = arith.addf %70, %74 : vector<4x4x8xf32>
    %cst_6 = arith.constant 0.000000e+00 : f32
    %76 = vector.broadcast %cst_6 : f32 to vector<4x4x8xf32>
    %77 = arith.maximumf %75, %76 : vector<4x4x8xf32>
    %78 = vector.shape_cast %77 : vector<4x4x8xf32> to vector<16x8xf32>
    %c0_7 = arith.constant 0 : index
    %c0_8 = arith.constant 0 : index
    %c0_9 = arith.constant 0 : index
    %79 = vector.load %arg5[%c0_7, %c0_8, %c0_9] : memref<3x8x128xf32, #tpu.memory_space<vmem>>, vector<1x8x128xf32>
    %80 = vector.shape_cast %79 : vector<1x8x128xf32> to vector<8x128xf32>
    %cst_10 = arith.constant dense<0.000000e+00> : vector<16x128xf32>
    %81 = tpu.matmul %78, %80, %cst_10 {dimension_numbers = #tpu.dot_dimension_numbers<[1], [0], [0], [1], [0, 0, 1, 1], [], []>} : vector<16x8xf32>, vector<8x128xf32>, vector<16x128xf32> -> vector<16x128xf32>
    %82 = arith.addf %8, %81 : vector<16x128xf32>
    %83 = vector.extract_strided_slice %7 {offsets = [0, 0, 0], sizes = [4, 4, 8], strides = [1, 1, 1]} : vector<6x6x8xf32> to vector<4x4x8xf32>
    %84 = vector.extract_strided_slice %3 {offsets = [9, 0], sizes = [1, 8], strides = [1, 1]} : vector<27x8xf32> to vector<1x8xf32>
    %85 = vector.shape_cast %84 : vector<1x8xf32> to vector<8xf32>
    %86 = vector.shape_cast %85 : vector<8xf32> to vector<1x1x8xf32>
    %87 = vector.broadcast %86 : vector<1x1x8xf32> to vector<4x4x8xf32>
    %88 = arith.mulf %83, %87 : vector<4x4x8xf32>
    %89 = vector.extract_strided_slice %7 {offsets = [0, 1, 0], sizes = [4, 4, 8], strides = [1, 1, 1]} : vector<6x6x8xf32> to vector<4x4x8xf32>
    %90 = vector.extract_strided_slice %3 {offsets = [10, 0], sizes = [1, 8], strides = [1, 1]} : vector<27x8xf32> to vector<1x8xf32>
    %91 = vector.shape_cast %90 : vector<1x8xf32> to vector<8xf32>
    %92 = vector.shape_cast %91 : vector<8xf32> to vector<1x1x8xf32>
    %93 = vector.broadcast %92 : vector<1x1x8xf32> to vector<4x4x8xf32>
    %94 = arith.mulf %89, %93 : vector<4x4x8xf32>
    %95 = arith.addf %88, %94 : vector<4x4x8xf32>
    %96 = vector.extract_strided_slice %7 {offsets = [0, 2, 0], sizes = [4, 4, 8], strides = [1, 1, 1]} : vector<6x6x8xf32> to vector<4x4x8xf32>
    %97 = vector.extract_strided_slice %3 {offsets = [11, 0], sizes = [1, 8], strides = [1, 1]} : vector<27x8xf32> to vector<1x8xf32>
    %98 = vector.shape_cast %97 : vector<1x8xf32> to vector<8xf32>
    %99 = vector.shape_cast %98 : vector<8xf32> to vector<1x1x8xf32>
    %100 = vector.broadcast %99 : vector<1x1x8xf32> to vector<4x4x8xf32>
    %101 = arith.mulf %96, %100 : vector<4x4x8xf32>
    %102 = arith.addf %95, %101 : vector<4x4x8xf32>
    %103 = vector.extract_strided_slice %7 {offsets = [1, 0, 0], sizes = [4, 4, 8], strides = [1, 1, 1]} : vector<6x6x8xf32> to vector<4x4x8xf32>
    %104 = vector.extract_strided_slice %3 {offsets = [12, 0], sizes = [1, 8], strides = [1, 1]} : vector<27x8xf32> to vector<1x8xf32>
    %105 = vector.shape_cast %104 : vector<1x8xf32> to vector<8xf32>
    %106 = vector.shape_cast %105 : vector<8xf32> to vector<1x1x8xf32>
    %107 = vector.broadcast %106 : vector<1x1x8xf32> to vector<4x4x8xf32>
    %108 = arith.mulf %103, %107 : vector<4x4x8xf32>
    %109 = arith.addf %102, %108 : vector<4x4x8xf32>
    %110 = vector.extract_strided_slice %7 {offsets = [1, 1, 0], sizes = [4, 4, 8], strides = [1, 1, 1]} : vector<6x6x8xf32> to vector<4x4x8xf32>
    %111 = vector.extract_strided_slice %3 {offsets = [13, 0], sizes = [1, 8], strides = [1, 1]} : vector<27x8xf32> to vector<1x8xf32>
    %112 = vector.shape_cast %111 : vector<1x8xf32> to vector<8xf32>
    %113 = vector.shape_cast %112 : vector<8xf32> to vector<1x1x8xf32>
    %114 = vector.broadcast %113 : vector<1x1x8xf32> to vector<4x4x8xf32>
    %115 = arith.mulf %110, %114 : vector<4x4x8xf32>
    %116 = arith.addf %109, %115 : vector<4x4x8xf32>
    %117 = vector.extract_strided_slice %7 {offsets = [1, 2, 0], sizes = [4, 4, 8], strides = [1, 1, 1]} : vector<6x6x8xf32> to vector<4x4x8xf32>
    %118 = vector.extract_strided_slice %3 {offsets = [14, 0], sizes = [1, 8], strides = [1, 1]} : vector<27x8xf32> to vector<1x8xf32>
    %119 = vector.shape_cast %118 : vector<1x8xf32> to vector<8xf32>
    %120 = vector.shape_cast %119 : vector<8xf32> to vector<1x1x8xf32>
    %121 = vector.broadcast %120 : vector<1x1x8xf32> to vector<4x4x8xf32>
    %122 = arith.mulf %117, %121 : vector<4x4x8xf32>
    %123 = arith.addf %116, %122 : vector<4x4x8xf32>
    %124 = vector.extract_strided_slice %7 {offsets = [2, 0, 0], sizes = [4, 4, 8], strides = [1, 1, 1]} : vector<6x6x8xf32> to vector<4x4x8xf32>
    %125 = vector.extract_strided_slice %3 {offsets = [15, 0], sizes = [1, 8], strides = [1, 1]} : vector<27x8xf32> to vector<1x8xf32>
    %126 = vector.shape_cast %125 : vector<1x8xf32> to vector<8xf32>
    %127 = vector.shape_cast %126 : vector<8xf32> to vector<1x1x8xf32>
    %128 = vector.broadcast %127 : vector<1x1x8xf32> to vector<4x4x8xf32>
    %129 = arith.mulf %124, %128 : vector<4x4x8xf32>
    %130 = arith.addf %123, %129 : vector<4x4x8xf32>
    %131 = vector.extract_strided_slice %7 {offsets = [2, 1, 0], sizes = [4, 4, 8], strides = [1, 1, 1]} : vector<6x6x8xf32> to vector<4x4x8xf32>
    %132 = vector.extract_strided_slice %3 {offsets = [16, 0], sizes = [1, 8], strides = [1, 1]} : vector<27x8xf32> to vector<1x8xf32>
    %133 = vector.shape_cast %132 : vector<1x8xf32> to vector<8xf32>
    %134 = vector.shape_cast %133 : vector<8xf32> to vector<1x1x8xf32>
    %135 = vector.broadcast %134 : vector<1x1x8xf32> to vector<4x4x8xf32>
    %136 = arith.mulf %131, %135 : vector<4x4x8xf32>
    %137 = arith.addf %130, %136 : vector<4x4x8xf32>
    %138 = vector.extract_strided_slice %7 {offsets = [2, 2, 0], sizes = [4, 4, 8], strides = [1, 1, 1]} : vector<6x6x8xf32> to vector<4x4x8xf32>
    %139 = vector.extract_strided_slice %3 {offsets = [17, 0], sizes = [1, 8], strides = [1, 1]} : vector<27x8xf32> to vector<1x8xf32>
    %140 = vector.shape_cast %139 : vector<1x8xf32> to vector<8xf32>
    %141 = vector.shape_cast %140 : vector<8xf32> to vector<1x1x8xf32>
    %142 = vector.broadcast %141 : vector<1x1x8xf32> to vector<4x4x8xf32>
    %143 = arith.mulf %138, %142 : vector<4x4x8xf32>
    %144 = arith.addf %137, %143 : vector<4x4x8xf32>
    %c1 = arith.constant 1 : index
    %c0_11 = arith.constant 0 : index
    %145 = vector.load %arg4[%c1, %c0_11] : memref<3x8xf32, #tpu.memory_space<vmem>>, vector<1x8xf32>
    %146 = vector.shape_cast %145 : vector<1x8xf32> to vector<8xf32>
    %147 = vector.shape_cast %146 : vector<8xf32> to vector<1x1x8xf32>
    %148 = vector.broadcast %147 : vector<1x1x8xf32> to vector<4x4x8xf32>
    %149 = arith.addf %144, %148 : vector<4x4x8xf32>
    %cst_12 = arith.constant 0.000000e+00 : f32
    %150 = vector.broadcast %cst_12 : f32 to vector<4x4x8xf32>
    %151 = arith.maximumf %149, %150 : vector<4x4x8xf32>
    %152 = vector.shape_cast %151 : vector<4x4x8xf32> to vector<16x8xf32>
    %c1_13 = arith.constant 1 : index
    %c0_14 = arith.constant 0 : index
    %c0_15 = arith.constant 0 : index
    %153 = vector.load %arg5[%c1_13, %c0_14, %c0_15] : memref<3x8x128xf32, #tpu.memory_space<vmem>>, vector<1x8x128xf32>
    %154 = vector.shape_cast %153 : vector<1x8x128xf32> to vector<8x128xf32>
    %cst_16 = arith.constant dense<0.000000e+00> : vector<16x128xf32>
    %155 = tpu.matmul %152, %154, %cst_16 {dimension_numbers = #tpu.dot_dimension_numbers<[1], [0], [0], [1], [0, 0, 1, 1], [], []>} : vector<16x8xf32>, vector<8x128xf32>, vector<16x128xf32> -> vector<16x128xf32>
    %156 = arith.addf %82, %155 : vector<16x128xf32>
    %157 = vector.extract_strided_slice %7 {offsets = [0, 0, 0], sizes = [4, 4, 8], strides = [1, 1, 1]} : vector<6x6x8xf32> to vector<4x4x8xf32>
    %158 = vector.extract_strided_slice %3 {offsets = [18, 0], sizes = [1, 8], strides = [1, 1]} : vector<27x8xf32> to vector<1x8xf32>
    %159 = vector.shape_cast %158 : vector<1x8xf32> to vector<8xf32>
    %160 = vector.shape_cast %159 : vector<8xf32> to vector<1x1x8xf32>
    %161 = vector.broadcast %160 : vector<1x1x8xf32> to vector<4x4x8xf32>
    %162 = arith.mulf %157, %161 : vector<4x4x8xf32>
    %163 = vector.extract_strided_slice %7 {offsets = [0, 1, 0], sizes = [4, 4, 8], strides = [1, 1, 1]} : vector<6x6x8xf32> to vector<4x4x8xf32>
    %164 = vector.extract_strided_slice %3 {offsets = [19, 0], sizes = [1, 8], strides = [1, 1]} : vector<27x8xf32> to vector<1x8xf32>
    %165 = vector.shape_cast %164 : vector<1x8xf32> to vector<8xf32>
    %166 = vector.shape_cast %165 : vector<8xf32> to vector<1x1x8xf32>
    %167 = vector.broadcast %166 : vector<1x1x8xf32> to vector<4x4x8xf32>
    %168 = arith.mulf %163, %167 : vector<4x4x8xf32>
    %169 = arith.addf %162, %168 : vector<4x4x8xf32>
    %170 = vector.extract_strided_slice %7 {offsets = [0, 2, 0], sizes = [4, 4, 8], strides = [1, 1, 1]} : vector<6x6x8xf32> to vector<4x4x8xf32>
    %171 = vector.extract_strided_slice %3 {offsets = [20, 0], sizes = [1, 8], strides = [1, 1]} : vector<27x8xf32> to vector<1x8xf32>
    %172 = vector.shape_cast %171 : vector<1x8xf32> to vector<8xf32>
    %173 = vector.shape_cast %172 : vector<8xf32> to vector<1x1x8xf32>
    %174 = vector.broadcast %173 : vector<1x1x8xf32> to vector<4x4x8xf32>
    %175 = arith.mulf %170, %174 : vector<4x4x8xf32>
    %176 = arith.addf %169, %175 : vector<4x4x8xf32>
    %177 = vector.extract_strided_slice %7 {offsets = [1, 0, 0], sizes = [4, 4, 8], strides = [1, 1, 1]} : vector<6x6x8xf32> to vector<4x4x8xf32>
    %178 = vector.extract_strided_slice %3 {offsets = [21, 0], sizes = [1, 8], strides = [1, 1]} : vector<27x8xf32> to vector<1x8xf32>
    %179 = vector.shape_cast %178 : vector<1x8xf32> to vector<8xf32>
    %180 = vector.shape_cast %179 : vector<8xf32> to vector<1x1x8xf32>
    %181 = vector.broadcast %180 : vector<1x1x8xf32> to vector<4x4x8xf32>
    %182 = arith.mulf %177, %181 : vector<4x4x8xf32>
    %183 = arith.addf %176, %182 : vector<4x4x8xf32>
    %184 = vector.extract_strided_slice %7 {offsets = [1, 1, 0], sizes = [4, 4, 8], strides = [1, 1, 1]} : vector<6x6x8xf32> to vector<4x4x8xf32>
    %185 = vector.extract_strided_slice %3 {offsets = [22, 0], sizes = [1, 8], strides = [1, 1]} : vector<27x8xf32> to vector<1x8xf32>
    %186 = vector.shape_cast %185 : vector<1x8xf32> to vector<8xf32>
    %187 = vector.shape_cast %186 : vector<8xf32> to vector<1x1x8xf32>
    %188 = vector.broadcast %187 : vector<1x1x8xf32> to vector<4x4x8xf32>
    %189 = arith.mulf %184, %188 : vector<4x4x8xf32>
    %190 = arith.addf %183, %189 : vector<4x4x8xf32>
    %191 = vector.extract_strided_slice %7 {offsets = [1, 2, 0], sizes = [4, 4, 8], strides = [1, 1, 1]} : vector<6x6x8xf32> to vector<4x4x8xf32>
    %192 = vector.extract_strided_slice %3 {offsets = [23, 0], sizes = [1, 8], strides = [1, 1]} : vector<27x8xf32> to vector<1x8xf32>
    %193 = vector.shape_cast %192 : vector<1x8xf32> to vector<8xf32>
    %194 = vector.shape_cast %193 : vector<8xf32> to vector<1x1x8xf32>
    %195 = vector.broadcast %194 : vector<1x1x8xf32> to vector<4x4x8xf32>
    %196 = arith.mulf %191, %195 : vector<4x4x8xf32>
    %197 = arith.addf %190, %196 : vector<4x4x8xf32>
    %198 = vector.extract_strided_slice %7 {offsets = [2, 0, 0], sizes = [4, 4, 8], strides = [1, 1, 1]} : vector<6x6x8xf32> to vector<4x4x8xf32>
    %199 = vector.extract_strided_slice %3 {offsets = [24, 0], sizes = [1, 8], strides = [1, 1]} : vector<27x8xf32> to vector<1x8xf32>
    %200 = vector.shape_cast %199 : vector<1x8xf32> to vector<8xf32>
    %201 = vector.shape_cast %200 : vector<8xf32> to vector<1x1x8xf32>
    %202 = vector.broadcast %201 : vector<1x1x8xf32> to vector<4x4x8xf32>
    %203 = arith.mulf %198, %202 : vector<4x4x8xf32>
    %204 = arith.addf %197, %203 : vector<4x4x8xf32>
    %205 = vector.extract_strided_slice %7 {offsets = [2, 1, 0], sizes = [4, 4, 8], strides = [1, 1, 1]} : vector<6x6x8xf32> to vector<4x4x8xf32>
    %206 = vector.extract_strided_slice %3 {offsets = [25, 0], sizes = [1, 8], strides = [1, 1]} : vector<27x8xf32> to vector<1x8xf32>
    %207 = vector.shape_cast %206 : vector<1x8xf32> to vector<8xf32>
    %208 = vector.shape_cast %207 : vector<8xf32> to vector<1x1x8xf32>
    %209 = vector.broadcast %208 : vector<1x1x8xf32> to vector<4x4x8xf32>
    %210 = arith.mulf %205, %209 : vector<4x4x8xf32>
    %211 = arith.addf %204, %210 : vector<4x4x8xf32>
    %212 = vector.extract_strided_slice %7 {offsets = [2, 2, 0], sizes = [4, 4, 8], strides = [1, 1, 1]} : vector<6x6x8xf32> to vector<4x4x8xf32>
    %213 = vector.extract_strided_slice %3 {offsets = [26, 0], sizes = [1, 8], strides = [1, 1]} : vector<27x8xf32> to vector<1x8xf32>
    %214 = vector.shape_cast %213 : vector<1x8xf32> to vector<8xf32>
    %215 = vector.shape_cast %214 : vector<8xf32> to vector<1x1x8xf32>
    %216 = vector.broadcast %215 : vector<1x1x8xf32> to vector<4x4x8xf32>
    %217 = arith.mulf %212, %216 : vector<4x4x8xf32>
    %218 = arith.addf %211, %217 : vector<4x4x8xf32>
    %c2 = arith.constant 2 : index
    %c0_17 = arith.constant 0 : index
    %219 = vector.load %arg4[%c2, %c0_17] : memref<3x8xf32, #tpu.memory_space<vmem>>, vector<1x8xf32>
    %220 = vector.shape_cast %219 : vector<1x8xf32> to vector<8xf32>
    %221 = vector.shape_cast %220 : vector<8xf32> to vector<1x1x8xf32>
    %222 = vector.broadcast %221 : vector<1x1x8xf32> to vector<4x4x8xf32>
    %223 = arith.addf %218, %222 : vector<4x4x8xf32>
    %cst_18 = arith.constant 0.000000e+00 : f32
    %224 = vector.broadcast %cst_18 : f32 to vector<4x4x8xf32>
    %225 = arith.maximumf %223, %224 : vector<4x4x8xf32>
    %226 = vector.shape_cast %225 : vector<4x4x8xf32> to vector<16x8xf32>
    %c2_19 = arith.constant 2 : index
    %c0_20 = arith.constant 0 : index
    %c0_21 = arith.constant 0 : index
    %227 = vector.load %arg5[%c2_19, %c0_20, %c0_21] : memref<3x8x128xf32, #tpu.memory_space<vmem>>, vector<1x8x128xf32>
    %228 = vector.shape_cast %227 : vector<1x8x128xf32> to vector<8x128xf32>
    %cst_22 = arith.constant dense<0.000000e+00> : vector<16x128xf32>
    %229 = tpu.matmul %226, %228, %cst_22 {dimension_numbers = #tpu.dot_dimension_numbers<[1], [0], [0], [1], [0, 0, 1, 1], [], []>} : vector<16x8xf32>, vector<8x128xf32>, vector<16x128xf32> -> vector<16x128xf32>
    %230 = arith.addf %156, %229 : vector<16x128xf32>
    %c0_23 = arith.constant 0 : index
    %c0_24 = arith.constant 0 : index
    %231 = vector.load %arg6[%c0_23, %c0_24] : memref<1x128xf32, #tpu.memory_space<vmem>>, vector<1x128xf32>
    %232 = vector.shape_cast %231 : vector<1x128xf32> to vector<128xf32>
    %233 = vector.shape_cast %232 : vector<128xf32> to vector<1x128xf32>
    %234 = vector.broadcast %233 : vector<1x128xf32> to vector<16x128xf32>
    %235 = arith.addf %230, %234 : vector<16x128xf32>
    %c0_25 = arith.constant 0 : index
    %c0_26 = arith.constant 0 : index
    %c0_27 = arith.constant 0 : index
    %236 = vector.load %arg7[%c0_25, %c0_26, %c0_27] : memref<1x16x128xf32, #tpu.memory_space<vmem>>, vector<1x16x128xf32>
    %237 = vector.shape_cast %236 : vector<1x16x128xf32> to vector<16x128xf32>
    %238 = vector.shape_cast %235 : vector<16x128xf32> to vector<1x16x128xf32>
    tpu.vector_store %arg7[%c0_25, %c0_26, %c0_27], %238 {strides = array<i32>} : memref<1x16x128xf32, #tpu.memory_space<vmem>>, vector<1x16x128xf32>,
    return
  }
  func.func @transform_0(%arg0: i32, %arg1: i32) -> (i32, i32, i32, i32) {
    %c0_i32 = arith.constant 0 : i32
    %c0_i32_0 = arith.constant 0 : i32
    %c0_i32_1 = arith.constant 0 : i32
    %c0_i32_2 = arith.constant 0 : i32
    return %arg0, %c0_i32, %c0_i32_0, %c0_i32_1 : i32, i32, i32, i32
  }
  func.func @transform_1(%arg0: i32, %arg1: i32) -> (i32, i32) {
    %c0_i32 = arith.constant 0 : i32
    %c0_i32_0 = arith.constant 0 : i32
    %c0_i32_1 = arith.constant 0 : i32
    return %c0_i32, %c0_i32_0 : i32, i32
  }
  func.func @transform_2(%arg0: i32, %arg1: i32) -> (i32, i32) {
    %c0_i32 = arith.constant 0 : i32
    %c0_i32_0 = arith.constant 0 : i32
    %c0_i32_1 = arith.constant 0 : i32
    return %c0_i32, %c0_i32_0 : i32, i32
  }
  func.func @transform_3(%arg0: i32, %arg1: i32) -> (i32, i32, i32) {
    %c0_i32 = arith.constant 0 : i32
    %c0_i32_0 = arith.constant 0 : i32
    %c0_i32_1 = arith.constant 0 : i32
    %c0_i32_2 = arith.constant 0 : i32
    return %c0_i32, %c0_i32_0, %c0_i32_1 : i32, i32, i32
  }
  func.func @transform_4(%arg0: i32, %arg1: i32) -> (i32, i32) {
    %c0_i32 = arith.constant 0 : i32
    %c0_i32_0 = arith.constant 0 : i32
    %c0_i32_1 = arith.constant 0 : i32
    return %c0_i32, %c0_i32_0 : i32, i32
  }
  func.func @transform_5(%arg0: i32, %arg1: i32) -> (i32, i32, i32) {
    %c0_i32 = arith.constant 0 : i32
    %c0_i32_0 = arith.constant 0 : i32
    return %arg0, %arg1, %c0_i32 : i32, i32, i32
  }
}

</mosaic_0001>

<llo_original>
// kernel: tpu_custom_call.1
$region0: #{tpu_custom_call.1}
  #allocation0 [shape = 'u32[]', space=smem, size = 0x4, offset = 0x4, fixed_abs, tag = 'smem constant byte address 0x4 - core index']
  #allocation1 [shape = 'u32[72,128]{1,0:T(1,128)}', space=vmem, size = 0x9000, scoped, tag = 'internal scratch']
  #allocation2 [shape = 'f32[6,6,8]{2,1,0:T(8,128)}', space=vmem, size = 0x6000, scoped, tag = 'scratch operand']
  %s0 = inlined_call_operand.vmem [shape: f32[2,4,4,8], index: 0, kind: input, shape index: {}]
  %s1 = inlined_call_operand.vmem [shape: f32[27,8], index: 1, kind: input, shape index: {}]
  %s2 = inlined_call_operand.vmem [shape: f32[3,8], index: 2, kind: input, shape index: {}]
  %s3 = inlined_call_operand.hbm [shape: f32[3,8,128], index: 3, kind: input, shape index: {}]
  %s4 = inlined_call_operand.vmem [shape: f32[1,128], index: 4, kind: input, shape index: {}]
  %s5 = inlined_call_operand.hbm [shape: f32[2,16,128], index: 5, kind: output, shape index: {}]
  %s6 = sld [smem:[#allocation0]]
  $region61: #{tpu_custom_call.1} parent=0
    _
  %s8 = ssub.s32 1, %s6
  %s9 = scalar_select 0, %s8, %s6
  $region1: #{tpu_custom_call.1} parent=0
    #allocation3 [shape = 'u8[12288]{0}', space=vmem, size = 0x3000, scoped, tag = 'input window, operand 3, single buffered']
    #allocation4 [shape = 's32[2]{0}', space=sflag, size = 0x8, scoped, tag = 'scoped memory for tpu_custom_call.1']
    #allocation5 [shape = 's32[2]{0}', space=sflag, size = 0x8, scoped, tag = 'scoped memory for tpu_custom_call.1']
    #allocation6 [shape = 'u8[16384]{0}', space=vmem, size = 0x4000, scoped, tag = 'output window, operand 0']
    %10 = vsyncpa [#allocation4], 0
    %11 = vsyncpa [#allocation5], 0
    %s12 = scalar_lea.sflag [#allocation5], 1
    %13 = vsyncpa %s12, 0
    loop: start=0, step=1, limit=4
    $region2: #{tpu_custom_call.1} parent=1 // loop_pre_header
      _
    $region3: #{tpu_custom_call.1} parent=1 // loop_header
      %s15 = sphi 0, %s19
      %p16 = scmp.ge.s32.totalorder %s15, 4
      %s22 = sphi 0, %s34
      %s23 = sphi 0, %s30
      %s24 = sphi 0, %s22
      %s25 = sphi 0, %s23
      %s26 = sphi 0, %s24
      %s27 = sphi 0, %s25
      %s37 = sphi 0, %s39
      %s40 = sphi 0, %s37
      %s41 = sphi 0, %s40
      %s57 = sphi 0, %s41
      %s61 = sphi 0, %s61
      %s63 = sphi 0, %s61
      %s64 = sphi 0, %s63
      %s78 = sphi 0, %s64
      %s82 = sphi 0, %s82
      %s84 = sphi 0, %s82
      %s85 = sphi 0, %s84
      %s99 = sphi 0, %s85
      %s103 = sphi 0, %s103
      %s105 = sphi 0, %s103
      %s106 = sphi 0, %s105
      %s120 = sphi 0, %s106
      %s124 = sphi 0, %s124
      %s126 = sphi 0, %s124
      %s127 = sphi 0, %s126
      %s141 = sphi 0, %s127
      %s149 = sphi 0, %s151
      %s152 = sphi 0, %s149
      %s153 = sphi 0, %s152
      %s169 = sphi 0, %s153
    $region4: #{tpu_custom_call.1} parent=1 // loop_header_branch
      %18 = sbr.rel (%p16) target = $region8
    $region5: #{tpu_custom_call.1} parent=1 // loop_body
      %s20 = ssub.s32 %s15, 1
      %s21 = ssub.s32 %s15, 2
      %s28 = sadd.s32 1, %s23
      %p29 = scmp.ge.s32.totalorder %s28, 1
      %s30 = scalar_select %p29, 0, %s28
      %s31 = sadd.s32 1, %s22
      %s32 = scalar_select %p29, %s31, %s22
      %p33 = scmp.ge.s32.totalorder %s32, 2
      %s34 = scalar_select %p33, 0, %s32
      %s35 = ssub.s32 %s22, %s34
      %p36 = scmp.eq.s32.totalorder %s35, 0
      %s38 = sadd.s32 %s37, 1
      %s39 = scalar_select %p36, %s37, %s38
      %p42 = pneg %p36
      %p43 = scmp.eq.s32.totalorder %s15, 1
      %p44 = por %p42, %p43
      %p45 = scmp.ne.s32.totalorder %s37, %s40
      %p46 = scmp.eq.s32.totalorder %s15, 0
      %p47 = por %p45, %p46
      %p48 = scmp.ne.s32.totalorder %s37, %s40
      %p49 = scmp.eq.s32.totalorder %s20, 1
      %p50 = por %p48, %p49
      %p51 = scmp.ne.s32.totalorder %s40, %s41
      %p52 = scmp.eq.s32.totalorder %s20, 0
      %p53 = por %p51, %p52
      %p54 = scmp.ne.s32.totalorder %s40, %s41
      %p55 = scmp.eq.s32.totalorder %s21, 1
      %p56 = por %p54, %p55
      %p58 = scmp.ne.s32.totalorder %s41, %s57
      %p59 = scmp.eq.s32.totalorder %s21, 0
      %p60 = por %p58, %p59
      %s62 = sadd.s32 %s61, 1
      %p65 = scmp.eq.s32.totalorder %s15, 1
      %p66 = scmp.ne.s32.totalorder %s61, %s63
      %p67 = scmp.eq.s32.totalorder %s15, 0
      %p68 = por %p66, %p67
      %p69 = scmp.ne.s32.totalorder %s61, %s63
      %p70 = scmp.eq.s32.totalorder %s20, 1
      %p71 = por %p69, %p70
      %p72 = scmp.ne.s32.totalorder %s63, %s64
      %p73 = scmp.eq.s32.totalorder %s20, 0
      %p74 = por %p72, %p73
      %p75 = scmp.ne.s32.totalorder %s63, %s64
      %p76 = scmp.eq.s32.totalorder %s21, 1
      %p77 = por %p75, %p76
      %p79 = scmp.ne.s32.totalorder %s64, %s78
      %p80 = scmp.eq.s32.totalorder %s21, 0
      %p81 = por %p79, %p80
      %s83 = sadd.s32 %s82, 1
      %p86 = scmp.eq.s32.totalorder %s15, 1
      %p87 = scmp.ne.s32.totalorder %s82, %s84
      %p88 = scmp.eq.s32.totalorder %s15, 0
      %p89 = por %p87, %p88
      %p90 = scmp.ne.s32.totalorder %s82, %s84
      %p91 = scmp.eq.s32.totalorder %s20, 1
      %p92 = por %p90, %p91
      %p93 = scmp.ne.s32.totalorder %s84, %s85
      %p94 = scmp.eq.s32.totalorder %s20, 0
      %p95 = por %p93, %p94
      %p96 = scmp.ne.s32.totalorder %s84, %s85
      %p97 = scmp.eq.s32.totalorder %s21, 1
      %p98 = por %p96, %p97
      %p100 = scmp.ne.s32.totalorder %s85, %s99
      %p101 = scmp.eq.s32.totalorder %s21, 0
      %p102 = por %p100, %p101
      %s104 = sadd.s32 %s103, 1
      %p107 = scmp.eq.s32.totalorder %s15, 1
      %p108 = scmp.ne.s32.totalorder %s103, %s105
      %p109 = scmp.eq.s32.totalorder %s15, 0
      %p110 = por %p108, %p109
      %p111 = scmp.ne.s32.totalorder %s103, %s105
      %p112 = scmp.eq.s32.totalorder %s20, 1
      %p113 = por %p111, %p112
      %p114 = scmp.ne.s32.totalorder %s105, %s106
      %p115 = scmp.eq.s32.totalorder %s20, 0
      %p116 = por %p114, %p115
      %p117 = scmp.ne.s32.totalorder %s105, %s106
      %p118 = scmp.eq.s32.totalorder %s21, 1
      %p119 = por %p117, %p118
      %p121 = scmp.ne.s32.totalorder %s106, %s120
      %p122 = scmp.eq.s32.totalorder %s21, 0
      %p123 = por %p121, %p122
      %s125 = sadd.s32 %s124, 1
      %p128 = scmp.eq.s32.totalorder %s15, 1
      %p129 = scmp.ne.s32.totalorder %s124, %s126
      %p130 = scmp.eq.s32.totalorder %s15, 0
      %p131 = por %p129, %p130
      %p132 = scmp.ne.s32.totalorder %s124, %s126
      %p133 = scmp.eq.s32.totalorder %s20, 1
      %p134 = por %p132, %p133
      %p135 = scmp.ne.s32.totalorder %s126, %s127
      %p136 = scmp.eq.s32.totalorder %s20, 0
      %p137 = por %p135, %p136
      %p138 = scmp.ne.s32.totalorder %s126, %s127
      %p139 = scmp.eq.s32.totalorder %s21, 1
      %p140 = por %p138, %p139
      %p142 = scmp.ne.s32.totalorder %s127, %s141
      %p143 = scmp.eq.s32.totalorder %s21, 0
      %p144 = por %p142, %p143
      %s145 = ssub.s32 %s22, %s34
      %s146 = ssub.s32 %s23, %s30
      %s147 = sor.u32 %s145, %s146
      %p148 = scmp.eq.s32.totalorder %s147, 0
      %s150 = sadd.s32 %s149, 1
      %s151 = scalar_select %p148, %s149, %s150
      %p154 = pneg %p148
      %p155 = scmp.eq.s32.totalorder %s15, 1
      %p156 = por %p154, %p155
      %p157 = scmp.ne.s32.totalorder %s149, %s152
      %p158 = scmp.eq.s32.totalorder %s15, 0
      %p159 = por %p157, %p158
      %p160 = scmp.ne.s32.totalorder %s149, %s152
      %p161 = scmp.eq.s32.totalorder %s20, 1
      %p162 = por %p160, %p161
      %p163 = scmp.ne.s32.totalorder %s152, %s153
      %p164 = scmp.eq.s32.totalorder %s20, 0
      %p165 = por %p163, %p164
      %p166 = scmp.ne.s32.totalorder %s152, %s153
      %p167 = scmp.eq.s32.totalorder %s21, 1
      %p168 = por %p166, %p167
      %p170 = scmp.ne.s32.totalorder %s153, %s169
      %p171 = scmp.eq.s32.totalorder %s21, 0
      %p172 = por %p170, %p171
      %p173 = scmp.le.s32.totalorder 1, %s15
      %p174 = scmp.lt.s32.totalorder %s15, 3
      %p175 = pnand %p173, %p174
      %p176 = pneg %p175
      // Predicated region
      $region9: #{tpu_custom_call.1} parent=5 // pred_check
        _
      $region10: #{tpu_custom_call.1} parent=5 // pred_check_branch
        %178 = sbr.rel (%p175) target = $region12
      $region11: #{tpu_custom_call.1} parent=5 // pred_region
        %s179 = ssub.s32 %s15, 1
        // Predicated region
        $region13: #{tpu_custom_call.1} parent=11 // pred_check
          %p180 = pneg %p74
        $region14: #{tpu_custom_call.1} parent=11 // pred_check_branch
          %182 = sbr.rel (%p180) target = $region16
        $region15: #{tpu_custom_call.1} parent=11 // pred_region
          _
        $region16: #{tpu_custom_call.1} parent=11 // pred_fallthru
          _
        // Predicated region
        $region17: #{tpu_custom_call.1} parent=11 // pred_check
          %p183 = pneg %p95
        $region18: #{tpu_custom_call.1} parent=11 // pred_check_branch
          %185 = sbr.rel (%p183) target = $region20
        $region19: #{tpu_custom_call.1} parent=11 // pred_region
          _
        $region20: #{tpu_custom_call.1} parent=11 // pred_fallthru
          _
        // Predicated region
        $region21: #{tpu_custom_call.1} parent=11 // pred_check
          %p186 = pneg %p116
        $region22: #{tpu_custom_call.1} parent=11 // pred_check_branch
          %188 = sbr.rel (%p186) target = $region24
        $region23: #{tpu_custom_call.1} parent=11 // pred_region
          %190 = vsyncadd [#allocation4], 0
          %s191 = sshll.u32 %s3, 4
          %s192 = int_to_ptr.hbm [resolvable:$true] %s191
          %s193 = sshll.u32 [#allocation3], 4
          %s194 = int_to_ptr.vmem [resolvable:$true] %s193
          %199 = dma.hbm_to_vmem [thread:$0]  %s192, 384, %s194, [#allocation4], 128, 128, 8
        $region24: #{tpu_custom_call.1} parent=11 // pred_fallthru
          _
        // Predicated region
        $region25: #{tpu_custom_call.1} parent=11 // pred_check
          %p200 = pneg %p137
        $region26: #{tpu_custom_call.1} parent=11 // pred_check_branch
          %202 = sbr.rel (%p200) target = $region28
        $region27: #{tpu_custom_call.1} parent=11 // pred_region
          _
        $region28: #{tpu_custom_call.1} parent=11 // pred_fallthru
          _
      $region12: #{tpu_custom_call.1} parent=5 // pred_fallthru
        _
      %p203 = scmp.lt.s32.totalorder %s15, 2
      // Predicated region
      $region29: #{tpu_custom_call.1} parent=5 // pred_check
        %p204 = pneg %p203
      $region30: #{tpu_custom_call.1} parent=5 // pred_check_branch
        %206 = sbr.rel (%p204) target = $region32
      $region31: #{tpu_custom_call.1} parent=5 // pred_region
        // Predicated region
        $region33: #{tpu_custom_call.1} parent=31 // pred_check
          %p207 = pneg %p47
        $region34: #{tpu_custom_call.1} parent=31 // pred_check_branch
          %209 = sbr.rel (%p207) target = $region36
        $region35: #{tpu_custom_call.1} parent=31 // pred_region
          %p210 = scmp.lt.s32.totalorder %s22, 1
          %s211 = scalar_select %p210, %s22, 1
          %s212 = smul.addr %s211, 4
          %s213 = smul.addr %s212, 4
          %s214 = scalar_lea.vmem %s0, %s213
        $region36: #{tpu_custom_call.1} parent=31 // pred_fallthru
          _
      $region32: #{tpu_custom_call.1} parent=5 // pred_fallthru
        _
      %p215 = scmp.le.s32.totalorder 1, %s15
      %p216 = scmp.lt.s32.totalorder %s15, 3
      %p217 = pnand %p215, %p216
      %p218 = pneg %p217
      // Predicated region
      $region37: #{tpu_custom_call.1} parent=5 // pred_check
        _
      $region38: #{tpu_custom_call.1} parent=5 // pred_check_branch
        %220 = sbr.rel (%p217) target = $region40
      $region39: #{tpu_custom_call.1} parent=5 // pred_region
        %s221 = ssub.s32 %s15, 1
        // Predicated region
        $region41: #{tpu_custom_call.1} parent=39 // pred_check
          %p222 = pneg %p116
        $region42: #{tpu_custom_call.1} parent=39 // pred_check_branch
          %224 = sbr.rel (%p222) target = $region44
        $region43: #{tpu_custom_call.1} parent=39 // pred_region
          %226 = dma.done [#allocation4], 384
        $region44: #{tpu_custom_call.1} parent=39 // pred_fallthru
          _
        %p227 = scmp.lt.s32.totalorder %s24, 1
        %s228 = scalar_select %p227, %s24, 1
        %s229 = smul.addr %s228, 4
        %s230 = smul.addr %s229, 4
        %s231 = scalar_lea.vmem %s0, %s230
        %p232 = pneg %p53
        %p233 = pneg %p50
        %p234 = pneg %p74
        %p235 = pneg %p71
        %p236 = pneg %p95
        %p237 = pneg %p92
        %p238 = pneg %p116
        %p239 = pneg %p113
        %p240 = pneg %p137
        %p241 = pneg %p134
        %p242 = pneg %p165
        %p243 = pneg %p162
        %s244 = sand.u32 %s152, 1
        %s245 = scalar_lea.sflag [#allocation5], %s244
        %s246 = sand.u32 %s152, 1
        %s247 = smul.addr %s246, 16
        %s248 = scalar_lea.vmem [#allocation6], %s247
        %p249 = scmp.lt.s32.totalorder %s24, 1
        %s250 = scalar_select %p249, %s24, 1
        %s251 = smul.addr %s250, 4
        %s252 = smul.addr %s251, 4
        %s253 = scalar_lea.vmem %s0, %s252
        %s254 = smul.u32 2, %s25
        %p255 = scmp.eq.s32.totalorder %s25, 0
        // Predicated region
        $region45: #{tpu_custom_call.1} parent=39 // pred_check
          %p256 = pneg %p255
        $region46: #{tpu_custom_call.1} parent=39 // pred_check_branch
          %258 = sbr.rel (%p256) target = $region48
        $region47: #{tpu_custom_call.1} parent=39 // pred_region
          %vm259 = vcmask 62464
          %260 = vst.msk [vmem:[#allocation2] sm:$0x3f] %vm259, 0.0
          %261 = vst.msk [vmem:[#allocation2 + $0x8] sm:$0x3f] %vm259, 0.0
          %262 = vst.msk [vmem:[#allocation2 + $0x10] sm:$0x3f] %vm259, 0.0
          %263 = vst.msk [vmem:[#allocation2 + $0x18] sm:$0x3f] %vm259, 0.0
          %264 = vst.msk [vmem:[#allocation2 + $0x20] sm:$0x3f] %vm259, 0.0
          %265 = vst.msk [vmem:[#allocation2 + $0x28] sm:$0x3f] %vm259, 0.0
          %v266 = vld [vmem:[%s253] sm:$0xf]
          %v267 = vld [vmem:[%s253 + $0x4] sm:$0xf]
          %v268 = vld [vmem:[%s253 + $0x8] sm:$0xf]
          %v269 = vld [vmem:[%s253 + $0xc] sm:$0xf]
          %s270 = scalar_lea.vmem [#allocation2], 8
          %vm271 = vcmask 60416
          %272 = vst.msk [vmem:[%s270 + $0x1] sm:$0xf] %vm271, %v266
          %273 = vst.msk [vmem:[%s270 + $0x9] sm:$0xf] %vm271, %v267
          %274 = vst.msk [vmem:[%s270 + $0x11] sm:$0xf] %vm271, %v268
          %275 = vst.msk [vmem:[%s270 + $0x19] sm:$0xf] %vm271, %v269
        $region48: #{tpu_custom_call.1} parent=39 // pred_fallthru
          _
        %v276 = vld [vmem:[%s1] sm:$0xff]
        %v277 = vld [vmem:[%s1 + $0x8] sm:$0xff]
        %v278 = vld [vmem:[%s1 + $0x10] sm:$0xff]
        %v279 = vld [vmem:[%s1 + $0x18] sm:$0x7]
        %s280 = smul.u32 %s25, 4
        %s281 = smul.u32 %s280, 8
        %s282 = scalar_lea.vmem [#allocation2], %s281
        %v283 = vld [vmem:[%s282] sm:$0x3f]
        %v284 = vld [vmem:[%s282 + $0x8] sm:$0x3f]
        %v285 = vld [vmem:[%s282 + $0x10] sm:$0x3f]
        %v286 = vld [vmem:[%s282 + $0x18] sm:$0x3f]
        %v287 = vld [vmem:[%s282 + $0x20] sm:$0x3f]
        %v288 = vld [vmem:[%s282 + $0x28] sm:$0x3f]
        %v289 = vperm.slane %v276, 0
        %v290 = vmul.f32 %v283, %v289
        %v291 = vmul.f32 %v284, %v289
        %v292 = vmul.f32 %v285, %v289
        %v293 = vmul.f32 %v286, %v289
        %v294 = vperm.slane %v276, 1
        %v295 = vmul.f32 %v283, %v294
        %v296 = vmul.f32 %v284, %v294
        %v297 = vmul.f32 %v285, %v294
        %v298 = vmul.f32 %v286, %v294
        %v303 = vrot.slane %v295, 1
        %v304 = vrot.slane %v296, 1
        %v305 = vrot.slane %v297, 1
        %v306 = vrot.slane %v298, 1
        %v311 = vadd.f32 %v290, %v303
        %v312 = vadd.f32 %v291, %v304
        %v313 = vadd.f32 %v292, %v305
        %v314 = vadd.f32 %v293, %v306
        %v315 = vperm.slane %v276, 2
        %v316 = vmul.f32 %v283, %v315
        %v317 = vmul.f32 %v284, %v315
        %v318 = vmul.f32 %v285, %v315
        %v319 = vmul.f32 %v286, %v315
        %v324 = vrot.slane %v316, 2
        %v325 = vrot.slane %v317, 2
        %v326 = vrot.slane %v318, 2
        %v327 = vrot.slane %v319, 2
        %v332 = vadd.f32 %v311, %v324
        %v333 = vadd.f32 %v312, %v325
        %v334 = vadd.f32 %v313, %v326
        %v335 = vadd.f32 %v314, %v327
        %v336 = vperm.slane %v276, 3
        %v337 = vmul.f32 %v284, %v336
        %v338 = vmul.f32 %v285, %v336
        %v339 = vmul.f32 %v286, %v336
        %v340 = vmul.f32 %v287, %v336
        %v341 = vadd.f32 %v332, %v337
        %v342 = vadd.f32 %v333, %v338
        %v343 = vadd.f32 %v334, %v339
        %v344 = vadd.f32 %v335, %v340
        %v345 = vperm.slane %v276, 4
        %v346 = vmul.f32 %v284, %v345
        %v347 = vmul.f32 %v285, %v345
        %v348 = vmul.f32 %v286, %v345
        %v349 = vmul.f32 %v287, %v345
        %v354 = vrot.slane %v346, 1
        %v355 = vrot.slane %v347, 1
        %v356 = vrot.slane %v348, 1
        %v357 = vrot.slane %v349, 1
        %v362 = vadd.f32 %v341, %v354
        %v363 = vadd.f32 %v342, %v355
        %v364 = vadd.f32 %v343, %v356
        %v365 = vadd.f32 %v344, %v357
        %v366 = vperm.slane %v276, 5
        %v367 = vmul.f32 %v284, %v366
        %v368 = vmul.f32 %v285, %v366
        %v369 = vmul.f32 %v286, %v366
        %v370 = vmul.f32 %v287, %v366
        %v375 = vrot.slane %v367, 2
        %v376 = vrot.slane %v368, 2
        %v377 = vrot.slane %v369, 2
        %v378 = vrot.slane %v370, 2
        %v383 = vadd.f32 %v362, %v375
        %v384 = vadd.f32 %v363, %v376
        %v385 = vadd.f32 %v364, %v377
        %v386 = vadd.f32 %v365, %v378
        %v387 = vperm.slane %v276, 6
        %v388 = vmul.f32 %v285, %v387
        %v389 = vmul.f32 %v286, %v387
        %v390 = vmul.f32 %v287, %v387
        %v391 = vmul.f32 %v288, %v387
        %v392 = vadd.f32 %v383, %v388
        %v393 = vadd.f32 %v384, %v389
        %v394 = vadd.f32 %v385, %v390
        %v395 = vadd.f32 %v386, %v391
        %v396 = vperm.slane %v276, 7
        %v397 = vmul.f32 %v285, %v396
        %v398 = vmul.f32 %v286, %v396
        %v399 = vmul.f32 %v287, %v396
        %v400 = vmul.f32 %v288, %v396
        %v405 = vrot.slane %v397, 1
        %v406 = vrot.slane %v398, 1
        %v407 = vrot.slane %v399, 1
        %v408 = vrot.slane %v400, 1
        %v413 = vadd.f32 %v392, %v405
        %v414 = vadd.f32 %v393, %v406
        %v415 = vadd.f32 %v394, %v407
        %v416 = vadd.f32 %v395, %v408
        %v417 = vperm.slane %v277, 0
        %v418 = vmul.f32 %v285, %v417
        %v419 = vmul.f32 %v286, %v417
        %v420 = vmul.f32 %v287, %v417
        %v421 = vmul.f32 %v288, %v417
        %v426 = vrot.slane %v418, 2
        %v427 = vrot.slane %v419, 2
        %v428 = vrot.slane %v420, 2
        %v429 = vrot.slane %v421, 2
        %v434 = vadd.f32 %v413, %v426
        %v435 = vadd.f32 %v414, %v427
        %v436 = vadd.f32 %v415, %v428
        %v437 = vadd.f32 %v416, %v429
        %v438 = vld [vmem:[%s2] sm:$0x1]
        %v439 = vperm.slane %v438, 0
        %v440 = vadd.f32 %v434, %v439
        %v441 = vadd.f32 %v435, %v439
        %v442 = vadd.f32 %v436, %v439
        %v443 = vadd.f32 %v437, %v439
        %v444 = vmax.f32 %v440, 0.0
        %v445 = vmax.f32 %v441, 0.0
        %v446 = vmax.f32 %v442, 0.0
        %v447 = vmax.f32 %v443, 0.0
        %v448 = vld [vmem:[#allocation3] sm:$0xff]
        %v449 = vperm.slane %v277, 1
        %v450 = vmul.f32 %v283, %v449
        %v451 = vmul.f32 %v284, %v449
        %v452 = vmul.f32 %v285, %v449
        %v453 = vmul.f32 %v286, %v449
        %v454 = vperm.slane %v277, 2
        %v455 = vmul.f32 %v283, %v454
        %v456 = vmul.f32 %v284, %v454
        %v457 = vmul.f32 %v285, %v454
        %v458 = vmul.f32 %v286, %v454
        %v463 = vrot.slane %v455, 1
        %v464 = vrot.slane %v456, 1
        %v465 = vrot.slane %v457, 1
        %v466 = vrot.slane %v458, 1
        %v471 = vadd.f32 %v450, %v463
        %v472 = vadd.f32 %v451, %v464
        %v473 = vadd.f32 %v452, %v465
        %v474 = vadd.f32 %v453, %v466
        %v475 = vperm.slane %v277, 3
        %v476 = vmul.f32 %v283, %v475
        %v477 = vmul.f32 %v284, %v475
        %v478 = vmul.f32 %v285, %v475
        %v479 = vmul.f32 %v286, %v475
        %v484 = vrot.slane %v476, 2
        %v485 = vrot.slane %v477, 2
        %v486 = vrot.slane %v478, 2
        %v487 = vrot.slane %v479, 2
        %v492 = vadd.f32 %v471, %v484
        %v493 = vadd.f32 %v472, %v485
        %v494 = vadd.f32 %v473, %v486
        %v495 = vadd.f32 %v474, %v487
        %v496 = vperm.slane %v277, 4
        %v497 = vmul.f32 %v284, %v496
        %v498 = vmul.f32 %v285, %v496
        %v499 = vmul.f32 %v286, %v496
        %v500 = vmul.f32 %v287, %v496
        %v501 = vadd.f32 %v492, %v497
        %v502 = vadd.f32 %v493, %v498
        %v503 = vadd.f32 %v494, %v499
        %v504 = vadd.f32 %v495, %v500
        %v505 = vperm.slane %v277, 5
        %v506 = vmul.f32 %v284, %v505
        %v507 = vmul.f32 %v285, %v505
        %v508 = vmul.f32 %v286, %v505
        %v509 = vmul.f32 %v287, %v505
        %v514 = vrot.slane %v506, 1
        %v515 = vrot.slane %v507, 1
        %v516 = vrot.slane %v508, 1
        %v517 = vrot.slane %v509, 1
        %v522 = vadd.f32 %v501, %v514
        %v523 = vadd.f32 %v502, %v515
        %v524 = vadd.f32 %v503, %v516
        %v525 = vadd.f32 %v504, %v517
        %v526 = vperm.slane %v277, 6
        %v527 = vmul.f32 %v284, %v526
        %v528 = vmul.f32 %v285, %v526
        %v529 = vmul.f32 %v286, %v526
        %v530 = vmul.f32 %v287, %v526
        %v535 = vrot.slane %v527, 2
        %v536 = vrot.slane %v528, 2
        %v537 = vrot.slane %v529, 2
        %v538 = vrot.slane %v530, 2
        %v543 = vadd.f32 %v522, %v535
        %v544 = vadd.f32 %v523, %v536
        %v545 = vadd.f32 %v524, %v537
        %v546 = vadd.f32 %v525, %v538
        %v547 = vperm.slane %v277, 7
        %v548 = vmul.f32 %v285, %v547
        %v549 = vmul.f32 %v286, %v547
        %v550 = vmul.f32 %v287, %v547
        %v551 = vmul.f32 %v288, %v547
        %v552 = vadd.f32 %v543, %v548
        %v553 = vadd.f32 %v544, %v549
        %v554 = vadd.f32 %v545, %v550
        %v555 = vadd.f32 %v546, %v551
        %v556 = vperm.slane %v278, 0
        %v557 = vmul.f32 %v285, %v556
        %v558 = vmul.f32 %v286, %v556
        %v559 = vmul.f32 %v287, %v556
        %v560 = vmul.f32 %v288, %v556
        %v565 = vrot.slane %v557, 1
        %v566 = vrot.slane %v558, 1
        %v567 = vrot.slane %v559, 1
        %v568 = vrot.slane %v560, 1
        %v573 = vadd.f32 %v552, %v565
        %v574 = vadd.f32 %v553, %v566
        %v575 = vadd.f32 %v554, %v567
        %v576 = vadd.f32 %v555, %v568
        %v577 = vperm.slane %v278, 1
        %v578 = vmul.f32 %v285, %v577
        %v579 = vmul.f32 %v286, %v577
        %v580 = vmul.f32 %v287, %v577
        %v581 = vmul.f32 %v288, %v577
        %v586 = vrot.slane %v578, 2
        %v587 = vrot.slane %v579, 2
        %v588 = vrot.slane %v580, 2
        %v589 = vrot.slane %v581, 2
        %v594 = vadd.f32 %v573, %v586
        %v595 = vadd.f32 %v574, %v587
        %v596 = vadd.f32 %v575, %v588
        %v597 = vadd.f32 %v576, %v589
        %v598 = vld [vmem:[%s2 + $0x1] sm:$0x1]
        %v599 = vperm.slane %v598, 0
        %v600 = vadd.f32 %v594, %v599
        %v601 = vadd.f32 %v595, %v599
        %v602 = vadd.f32 %v596, %v599
        %v603 = vadd.f32 %v597, %v599
        %v604 = vmax.f32 %v600, 0.0
        %v605 = vmax.f32 %v601, 0.0
        %v606 = vmax.f32 %v602, 0.0
        %v607 = vmax.f32 %v603, 0.0
        %s608 = scalar_lea.vmem [#allocation3], 8
        %v609 = vld [vmem:[%s608] sm:$0xff]
        %614 = vst [vmem:[#allocation1] ss:$2 sm:$0xff] %v604
        %s615 = scalar_lea.vmem [#allocation1], 1
        %616 = vst [vmem:[%s615] ss:$2 sm:$0xff] %v605
        %s617 = scalar_lea.vmem [#allocation1], 16
        %618 = vst [vmem:[%s617] ss:$2 sm:$0xff] %v606
        %s619 = scalar_lea.vmem [#allocation1], 17
        %620 = vst [vmem:[%s619] ss:$2 sm:$0xff] %v607
        %v621 = vld.sshfl [vmem:[#allocation1] sm:$0xff pattern:$0x75316420]
        %v622 = vld.sshfl [vmem:[#allocation1 + $0x10] sm:$0xff pattern:$0x75316420]
        %vm623 = vcmask 64512
        %v624 = vsel %vm623, %v621, 0
        %v626 = vsel %vm623, %v622, 0
        %628 = vmatpush.msra.mxu0 0.0
        %629 = vmatpush.msra.mxu0 0.0
        %630 = vmatpush.msra.mxu0 0.0
        %631 = vmatpush.msra.mxu0 0.0
        %632 = vmatpush.msra.mxu0 0.0
        %633 = vmatpush.msra.mxu0 0.0
        %634 = vmatpush.msra.mxu0 0.0
        %635 = vmatpush.msra.mxu0 0.0
        %636 = vmatpush.msra.mxu0 0.0
        %637 = vmatpush.msra.mxu0 0.0
        %638 = vmatpush.msra.mxu0 0.0
        %639 = vmatpush.msra.mxu0 0.0
        %640 = vmatpush.msra.mxu0 0.0
        %641 = vmatpush.msra.mxu0 0.0
        %642 = vmatpush.msra.mxu0 0.0
        %643 = vmatpush.msra.mxu0 %v609
        %644 = vmatmul.f32.gmra.mxu0 %v624
        %v645 = vpop.f32.mrf.mxu0
        %v646 = vadd.f32 0.0, %v645
        %647 = vmatmul.f32.gmra.mxu0 %v626
        %v648 = vpop.f32.mrf.mxu0
        %v649 = vadd.f32 0.0, %v648
        %650 = vdwg.mxu0
        %655 = vst [vmem:[#allocation1] ss:$2 sm:$0xff] %v444
        %s656 = scalar_lea.vmem [#allocation1], 1
        %657 = vst [vmem:[%s656] ss:$2 sm:$0xff] %v445
        %s658 = scalar_lea.vmem [#allocation1], 16
        %659 = vst [vmem:[%s658] ss:$2 sm:$0xff] %v446
        %s660 = scalar_lea.vmem [#allocation1], 17
        %661 = vst [vmem:[%s660] ss:$2 sm:$0xff] %v447
        %v662 = vld.sshfl [vmem:[#allocation1] sm:$0xff pattern:$0x75316420]
        %v663 = vld.sshfl [vmem:[#allocation1 + $0x10] sm:$0xff pattern:$0x75316420]
        %v664 = vsel %vm623, %v662, 0
        %v666 = vsel %vm623, %v663, 0
        %668 = vmatpush.msra.mxu0 0.0
        %669 = vmatpush.msra.mxu0 0.0
        %670 = vmatpush.msra.mxu0 0.0
        %671 = vmatpush.msra.mxu0 0.0
        %672 = vmatpush.msra.mxu0 0.0
        %673 = vmatpush.msra.mxu0 0.0
        %674 = vmatpush.msra.mxu0 0.0
        %675 = vmatpush.msra.mxu0 0.0
        %676 = vmatpush.msra.mxu0 0.0
        %677 = vmatpush.msra.mxu0 0.0
        %678 = vmatpush.msra.mxu0 0.0
        %679 = vmatpush.msra.mxu0 0.0
        %680 = vmatpush.msra.mxu0 0.0
        %681 = vmatpush.msra.mxu0 0.0
        %682 = vmatpush.msra.mxu0 0.0
        %683 = vmatpush.msra.mxu0 %v448
        %684 = vmatmul.f32.gmra.mxu0 %v664
        %v685 = vpop.f32.mrf.mxu0
        %v686 = vadd.f32 %v646, %v685
        %687 = vmatmul.f32.gmra.mxu0 %v666
        %v688 = vpop.f32.mrf.mxu0
        %v689 = vadd.f32 %v649, %v688
        %690 = vdwg.mxu0
        %v691 = vperm.slane %v278, 2
        %v692 = vmul.f32 %v283, %v691
        %v693 = vmul.f32 %v284, %v691
        %v694 = vmul.f32 %v285, %v691
        %v695 = vmul.f32 %v286, %v691
        %v696 = vperm.slane %v278, 3
        %v697 = vmul.f32 %v283, %v696
        %v698 = vmul.f32 %v284, %v696
        %v699 = vmul.f32 %v285, %v696
        %v700 = vmul.f32 %v286, %v696
        %v705 = vrot.slane %v697, 1
        %v706 = vrot.slane %v698, 1
        %v707 = vrot.slane %v699, 1
        %v708 = vrot.slane %v700, 1
        %v713 = vadd.f32 %v692, %v705
        %v714 = vadd.f32 %v693, %v706
        %v715 = vadd.f32 %v694, %v707
        %v716 = vadd.f32 %v695, %v708
        %v717 = vperm.slane %v278, 4
        %v718 = vmul.f32 %v283, %v717
        %v719 = vmul.f32 %v284, %v717
        %v720 = vmul.f32 %v285, %v717
        %v721 = vmul.f32 %v286, %v717
        %v726 = vrot.slane %v718, 2
        %v727 = vrot.slane %v719, 2
        %v728 = vrot.slane %v720, 2
        %v729 = vrot.slane %v721, 2
        %v734 = vadd.f32 %v713, %v726
        %v735 = vadd.f32 %v714, %v727
        %v736 = vadd.f32 %v715, %v728
        %v737 = vadd.f32 %v716, %v729
        %v738 = vperm.slane %v278, 5
        %v739 = vmul.f32 %v284, %v738
        %v740 = vmul.f32 %v285, %v738
        %v741 = vmul.f32 %v286, %v738
        %v742 = vmul.f32 %v287, %v738
        %v743 = vadd.f32 %v734, %v739
        %v744 = vadd.f32 %v735, %v740
        %v745 = vadd.f32 %v736, %v741
        %v746 = vadd.f32 %v737, %v742
        %v747 = vperm.slane %v278, 6
        %v748 = vmul.f32 %v284, %v747
        %v749 = vmul.f32 %v285, %v747
        %v750 = vmul.f32 %v286, %v747
        %v751 = vmul.f32 %v287, %v747
        %v756 = vrot.slane %v748, 1
        %v757 = vrot.slane %v749, 1
        %v758 = vrot.slane %v750, 1
        %v759 = vrot.slane %v751, 1
        %v764 = vadd.f32 %v743, %v756
        %v765 = vadd.f32 %v744, %v757
        %v766 = vadd.f32 %v745, %v758
        %v767 = vadd.f32 %v746, %v759
        %v768 = vperm.slane %v278, 7
        %v769 = vmul.f32 %v284, %v768
        %v770 = vmul.f32 %v285, %v768
        %v771 = vmul.f32 %v286, %v768
        %v772 = vmul.f32 %v287, %v768
        %v777 = vrot.slane %v769, 2
        %v778 = vrot.slane %v770, 2
        %v779 = vrot.slane %v771, 2
        %v780 = vrot.slane %v772, 2
        %v785 = vadd.f32 %v764, %v777
        %v786 = vadd.f32 %v765, %v778
        %v787 = vadd.f32 %v766, %v779
        %v788 = vadd.f32 %v767, %v780
        %v789 = vperm.slane %v279, 0
        %v790 = vmul.f32 %v285, %v789
        %v791 = vmul.f32 %v286, %v789
        %v792 = vmul.f32 %v287, %v789
        %v793 = vmul.f32 %v288, %v789
        %v794 = vadd.f32 %v785, %v790
        %v795 = vadd.f32 %v786, %v791
        %v796 = vadd.f32 %v787, %v792
        %v797 = vadd.f32 %v788, %v793
        %v798 = vperm.slane %v279, 1
        %v799 = vmul.f32 %v285, %v798
        %v800 = vmul.f32 %v286, %v798
        %v801 = vmul.f32 %v287, %v798
        %v802 = vmul.f32 %v288, %v798
        %v807 = vrot.slane %v799, 1
        %v808 = vrot.slane %v800, 1
        %v809 = vrot.slane %v801, 1
        %v810 = vrot.slane %v802, 1
        %v815 = vadd.f32 %v794, %v807
        %v816 = vadd.f32 %v795, %v808
        %v817 = vadd.f32 %v796, %v809
        %v818 = vadd.f32 %v797, %v810
        %v819 = vperm.slane %v279, 2
        %v820 = vmul.f32 %v285, %v819
        %v821 = vmul.f32 %v286, %v819
        %v822 = vmul.f32 %v287, %v819
        %v823 = vmul.f32 %v288, %v819
        %v828 = vrot.slane %v820, 2
        %v829 = vrot.slane %v821, 2
        %v830 = vrot.slane %v822, 2
        %v831 = vrot.slane %v823, 2
        %v836 = vadd.f32 %v815, %v828
        %v837 = vadd.f32 %v816, %v829
        %v838 = vadd.f32 %v817, %v830
        %v839 = vadd.f32 %v818, %v831
        %v840 = vld [vmem:[%s2 + $0x2] sm:$0x1]
        %v841 = vperm.slane %v840, 0
        %v842 = vadd.f32 %v836, %v841
        %v843 = vadd.f32 %v837, %v841
        %v844 = vadd.f32 %v838, %v841
        %v845 = vadd.f32 %v839, %v841
        %v846 = vmax.f32 %v842, 0.0
        %v847 = vmax.f32 %v843, 0.0
        %v848 = vmax.f32 %v844, 0.0
        %v849 = vmax.f32 %v845, 0.0
        %s850 = scalar_lea.vmem [#allocation3], 16
        %v851 = vld [vmem:[%s850] sm:$0xff]
        %856 = vst [vmem:[#allocation1] ss:$2 sm:$0xff] %v846
        %s857 = scalar_lea.vmem [#allocation1], 1
        %858 = vst [vmem:[%s857] ss:$2 sm:$0xff] %v847
        %s859 = scalar_lea.vmem [#allocation1], 16
        %860 = vst [vmem:[%s859] ss:$2 sm:$0xff] %v848
        %s861 = scalar_lea.vmem [#allocation1], 17
        %862 = vst [vmem:[%s861] ss:$2 sm:$0xff] %v849
        %v863 = vld.sshfl [vmem:[#allocation1] sm:$0xff pattern:$0x75316420]
        %v864 = vld.sshfl [vmem:[#allocation1 + $0x10] sm:$0xff pattern:$0x75316420]
        %v865 = vsel %vm623, %v863, 0
        %v867 = vsel %vm623, %v864, 0
        %869 = vmatpush.msra.mxu0 0.0
        %870 = vmatpush.msra.mxu0 0.0
        %871 = vmatpush.msra.mxu0 0.0
        %872 = vmatpush.msra.mxu0 0.0
        %873 = vmatpush.msra.mxu0 0.0
        %874 = vmatpush.msra.mxu0 0.0
        %875 = vmatpush.msra.mxu0 0.0
        %876 = vmatpush.msra.mxu0 0.0
        %877 = vmatpush.msra.mxu0 0.0
        %878 = vmatpush.msra.mxu0 0.0
        %879 = vmatpush.msra.mxu0 0.0
        %880 = vmatpush.msra.mxu0 0.0
        %881 = vmatpush.msra.mxu0 0.0
        %882 = vmatpush.msra.mxu0 0.0
        %883 = vmatpush.msra.mxu0 0.0
        %884 = vmatpush.msra.mxu0 %v851
        %885 = vmatmul.f32.gmra.mxu0 %v865
        %v886 = vpop.f32.mrf.mxu0
        %v887 = vadd.f32 0.0, %v886
        %888 = vmatmul.f32.gmra.mxu0 %v867
        %v889 = vpop.f32.mrf.mxu0
        %v890 = vadd.f32 0.0, %v889
        %891 = vdwg.mxu0
        %v892 = vadd.f32 %v686, %v887
        %v893 = vadd.f32 %v689, %v890
        %v894 = vld [vmem:[%s4] sm:$0x1]
        %v896 = vperm.slane %v894, 0
        %v898 = vadd.f32 %v892, %v896
        %v899 = vadd.f32 %v893, %v896
        %900 = vst [vmem:[%s248] sm:$0xff] %v898
        %901 = vst [vmem:[%s248 + $0x8] sm:$0xff] %v899
        %s902 = sand.u32 %s152, 1
        %s903 = scalar_lea.sflag [#allocation5], %s902
        %s904 = sand.u32 %s152, 1
        %s905 = smul.addr %s904, 16
        %s906 = scalar_lea.vmem [#allocation6], %s905
        // Predicated region
        $region49: #{tpu_custom_call.1} parent=39 // pred_check
          %p907 = pneg %p162
        $region50: #{tpu_custom_call.1} parent=39 // pred_check_branch
          %909 = sbr.rel (%p907) target = $region52
        $region51: #{tpu_custom_call.1} parent=39 // pred_region
          %s910 = smul.u32 2, %s25
          %912 = vsyncadd %s903, 0
          %s913 = smul.addr %s24, 2
          %s914 = sadd.s32 %s910, %s913
          %s915 = smul.addr %s914, 8
          %s916 = scalar_lea.hbm %s5, %s915
          %s917 = sshll.u32 %s906, 4
          %s918 = int_to_ptr.vmem [resolvable:$true] %s917
          %s919 = sshll.u32 %s916, 4
          %s920 = int_to_ptr.hbm [resolvable:$true] %s919
          %925 = dma.vmem_to_hbm [thread:$0]  %s918, 256, %s920, %s903, 128, 128, 8
        $region52: #{tpu_custom_call.1} parent=39 // pred_fallthru
          _
      $region40: #{tpu_custom_call.1} parent=5 // pred_fallthru
        _
      %p926 = scmp.le.s32.totalorder 2, %s15
      // Predicated region
      $region53: #{tpu_custom_call.1} parent=5 // pred_check
        %p927 = pneg %p926
      $region54: #{tpu_custom_call.1} parent=5 // pred_check_branch
        %929 = sbr.rel (%p927) target = $region56
      $region55: #{tpu_custom_call.1} parent=5 // pred_region
        %s930 = ssub.s32 %s15, 2
        // Predicated region
        $region57: #{tpu_custom_call.1} parent=55 // pred_check
          %p931 = pneg %p168
        $region58: #{tpu_custom_call.1} parent=55 // pred_check_branch
          %933 = sbr.rel (%p931) target = $region60
        $region59: #{tpu_custom_call.1} parent=55 // pred_region
          %s934 = sand.u32 %s153, 1
          %s935 = scalar_lea.sflag [#allocation5], %s934
          %s936 = sand.u32 %s153, 1
          %s937 = smul.addr %s936, 16
          %s938 = scalar_lea.vmem [#allocation6], %s937
          %940 = dma.done %s935, 256
        $region60: #{tpu_custom_call.1} parent=55 // pred_fallthru
          _
      $region56: #{tpu_custom_call.1} parent=5 // pred_fallthru
        _
    $region6: #{tpu_custom_call.1} parent=1 // loop_footer
      %s19 = sadd.s32 1, %s15
    $region7: #{tpu_custom_call.1} parent=1 // loop_footer_branch
      %14 = sbr.rel target = $region3
    $region8: #{tpu_custom_call.1} parent=1 // loop_exit
      _
    %941 = vsyncpa [#allocation4], 1
    %s942 = scalar_lea.sflag [#allocation4], 1
    %943 = vsyncpa %s942, 1
    %944 = vsyncpa [#allocation5], 1
    %s945 = scalar_lea.sflag [#allocation5], 1
    %946 = vsyncpa %s945, 1

</llo_original>
